<compile_context>
chip_gen: v6e
topology: v6e:2x2x1
jax: 0.10.0
libtpu: 0.0.40
codegen_flags: <defaults>
</compile_context>

<pallas_src>
import math

import jax
import jax.numpy as jnp
from jax.experimental import pallas as pl
from jax.experimental.pallas import tpu as pltpu

H1, H2 = 400, 300          # logical hidden sizes (PyTorch module)
H1P, H2P = 512, 384        # zero-padded to multiples of 128 (bit-exact)


def _round_up(x, m):
    return ((x + m - 1) // m) * m


def critic_kernel(s_ref, a_ref, w1_ref, b1_ref, w2s_ref, w2a_ref, b2_ref,
                  w3_ref, b3_ref, o_ref):
    # Layer 1: relu(state @ W1 + b1)                          -> [TB, 512]
    q1 = jnp.dot(s_ref[...], w1_ref[...], preferred_element_type=jnp.float32)
    q1 = jnp.maximum(q1 + b1_ref[...], 0.0)

    # Action path (K = action_dims, kept f32): abias = action @ W2[400:] + b2.
    # Tiny vs. the layer-2 matmul (~1% of its cycles); doing it in-kernel
    # avoids a [B, 384] f32 HBM round trip through a separate XLA op.
    abias = jnp.dot(a_ref[...], w2a_ref[...],
                    preferred_element_type=jnp.float32) + b2_ref[...]

    # Layer 2: relu(q1 @ W2[:400] + abias)                    -> [TB, 384]
    q2 = jnp.dot(q1.astype(w2s_ref.dtype), w2s_ref[...],
                 preferred_element_type=jnp.float32)
    q2 = jnp.maximum(q2 + abias, 0.0)

    # Layer 3: an N=1 MXU matmul would fill 1 of 128/256 result columns; do
    # the dot product on the VPU/XLU instead (multiply + lane reduction),
    # which overlaps with the MXU-bound layer 2.
    q3 = jnp.sum(q2 * w3_ref[...].astype(jnp.float32), axis=-1, keepdims=True)
    o_ref[...] = q3 + b3_ref[...]


def critic_forward(state, action, params, *, block_b=512):
    """Runs the Critic forward pass with a Pallas TPU kernel."""
    w1, b1, w2s, w2a, b2, w3row, b3 = params
    B, S = state.shape
    A = action.shape[1]
    compute_dtype = w1.dtype

    # Batch tiling: pad B up to a multiple of the batch tile.  Padded rows are
    # computed on zeros and sliced off at the end (harmless garbage).
    # bf16 packs 16 rows per sublane pair -> round the tile to 16 in that case.
    row_align = 16 if compute_dtype == jnp.bfloat16 else 8
    tb = min(block_b, _round_up(max(B, 1), row_align))
    bp = _round_up(B, tb)
    action = action.astype(jnp.float32)
    if bp != B:
        state = jnp.pad(state, ((0, bp - B), (0, 0)))
        action = jnp.pad(action, ((0, bp - B), (0, 0)))
    state = state.astype(compute_dtype)

    grid = (bp // tb,)

    def batch_spec(shape):                       # tiled over the batch grid
        return pl.BlockSpec(shape, lambda i: (i, 0))

    def const_spec(shape):                       # resident in VMEM
        return pl.BlockSpec(shape, lambda i: (0, 0))

    itemsize = jnp.dtype(compute_dtype).itemsize
    flops = 2 * bp * (S * H1P + (H1P + A) * H2P + H2P)
    bytes_accessed = (
        bp * (S * itemsize + A * 4 + 4)                         # tiled I/O
        + (w1.size + w2s.size + w3row.size) * itemsize          # bf16-able wts
        + (w2a.size + b1.size + b2.size + b3.size) * 4)         # f32 params

    # VMEM budget @ TB=512 (f32): 2x(state+action+out) tiles < 0.1 MiB,
    # resident weights (double-buffered by default) ~ 1.6 MiB, q1/q2
    # intermediates ~ 1.8 MiB  ->  well under the explicit 32 MiB limit
    # (and v7x's 64 MiB physical VMEM).
    # TODO(synk): on v7x, if xprof shows one TensorCore idle, switch the batch
    # axis to pltpu.CORE_PARALLEL (or pl.core_map) to guarantee 2-TC sharding.
    out = pl.pallas_call(
        critic_kernel,
        out_shape=jax.ShapeDtypeStruct((bp, 1), jnp.float32),
        grid=grid,
        in_specs=[
            batch_spec((tb, S)),       # state tile
            batch_spec((tb, A)),       # action tile (f32)
            const_spec((S, H1P)),      # W1          (resident)
            const_spec((1, H1P)),      # b1          (resident, f32)
            const_spec((H1P, H2P)),    # W2[:400,:]  (resident)
            const_spec((A, H2P)),      # W2[400:,:]  (resident, f32)
            const_spec((1, H2P)),      # b2          (resident, f32)
            const_spec((1, H2P)),      # W3 row      (resident)
            const_spec((1, 1)),        # b3          (resident, f32)
        ],
        out_specs=batch_spec((tb, 1)),
        compiler_params=pltpu.CompilerParams(
            dimension_semantics=("parallel",),      # megacore on v7x
            vmem_limit_bytes=32 * 1024 * 1024),
        cost_estimate=pl.CostEstimate(
            flops=flops, transcendentals=0, bytes_accessed=bytes_accessed),
    )(state, action, w1, b1, w2s, w2a, b2, w3row, b3)
    return out[:B]


def make_critic_params(key, state_dims, action_dims, *,
                       compute_dtype=jnp.float32):
    """PyTorch nn.Linear default init, weights stored [in, out], hidden dims
    zero-padded to 128-multiples.  compute_dtype=bfloat16 stores the big
    matmul weights in bf16 (f32 accumulation is kept inside the kernel);
    recommended default on v5e.  Biases and the action-path weights stay f32."""
    k1, k2, k3 = jax.random.split(key, 3)

    def init_linear(k, fan_in, n_out):
        kw, kb = jax.random.split(k)
        bound = 1.0 / math.sqrt(fan_in)
        w = jax.random.uniform(kw, (fan_in, n_out), jnp.float32, -bound, bound)
        b = jax.random.uniform(kb, (1, n_out), jnp.float32, -bound, bound)
        return w, b

    w1, b1 = init_linear(k1, state_dims, H1)
    w2, b2 = init_linear(k2, H1 + action_dims, H2)
    w3, b3 = init_linear(k3, H2, 1)

    w1p = jnp.pad(w1, ((0, 0), (0, H1P - H1))).astype(compute_dtype)
    b1p = jnp.pad(b1, ((0, 0), (0, H1P - H1)))                      # f32
    w2s = jnp.pad(w2[:H1, :], ((0, H1P - H1), (0, H2P - H2))).astype(
        compute_dtype)
    w2a = jnp.pad(w2[H1:, :], ((0, 0), (0, H2P - H2)))              # f32
    b2p = jnp.pad(b2, ((0, 0), (0, H2P - H2)))                      # f32
    w3row = jnp.pad(w3.T, ((0, 0), (0, H2P - H2))).astype(compute_dtype)
    b3p = b3.reshape(1, 1)                                          # f32
    return (w1p, b1p, w2s, w2a, b2p, w3row, b3p)


def critic_ref(state, action, params):
    """Pure-JAX reference (exact w.r.t. the PyTorch module for f32 params)."""
    w1, b1, w2s, w2a, b2, w3row, b3 = params
    q = jnp.maximum(state @ w1.astype(jnp.float32) + b1, 0.0)
    q = jnp.maximum(q @ w2s.astype(jnp.float32) + action @ w2a + b2, 0.0)
    return jnp.sum(q * w3row.astype(jnp.float32), axis=-1, keepdims=True) + b3


if __name__ == "__main__":
    key = jax.random.PRNGKey(0)
    k_params, k_state, k_action = jax.random.split(key, 3)

    B = 2
    state_dims = 16
    action_dims = 4

    state = jax.random.normal(k_state, (B, state_dims), jnp.float32)
    action = jax.random.normal(k_action, (B, action_dims), jnp.float32)

    fwd = jax.jit(critic_forward)

    # f32 path: exact vs reference.
    params_f32 = make_critic_params(k_params, state_dims, action_dims)
    out = jax.block_until_ready(fwd(state, action, params_f32))
    ref = critic_ref(state, action, params_f32)
    assert out.shape == (B, 1)
    assert jnp.allclose(out, ref, atol=1e-4, rtol=1e-4)

    # bf16-weight path (MXU/HBM throughput lever, esp. v5e): looser tolerance.
    params_bf16 = make_critic_params(k_params, state_dims, action_dims,
                                     compute_dtype=jnp.bfloat16)
    out_bf16 = jax.block_until_ready(fwd(state, action, params_bf16))
    assert jnp.allclose(out_bf16, ref, atol=5e-2, rtol=5e-2)

    print("KERNEL_OK")
</pallas_src>

<mosaic_0001>
module attributes {stable_mosaic.version = 11 : i64} {
  func.func @critic_kernel(%arg0: i32, %arg1: memref<8x16xf32, #tpu.memory_space<vmem>>, %arg2: memref<8x4xf32, #tpu.memory_space<vmem>>, %arg3: memref<16x512xf32, #tpu.memory_space<vmem>>, %arg4: memref<1x512xf32, #tpu.memory_space<vmem>>, %arg5: memref<512x384xf32, #tpu.memory_space<vmem>>, %arg6: memref<4x384xf32, #tpu.memory_space<vmem>>, %arg7: memref<1x384xf32, #tpu.memory_space<vmem>>, %arg8: memref<1x384xf32, #tpu.memory_space<vmem>>, %arg9: memref<1x1xf32, #tpu.memory_space<vmem>>, %arg10: memref<8x1xf32, #tpu.memory_space<vmem>>) attributes {dimension_semantics = [#tpu.dimension_semantics<parallel>], iteration_bounds = array<i64: 1>, scalar_prefetch = 0 : i64, scratch_operands = 0 : i64, tpu.core_type = #tpu.core_type<tc>, window_params = [{transform_indices = @transform_0, window_bounds = array<i64: 8, 16>}, {transform_indices = @transform_1, window_bounds = array<i64: 8, 4>}, {pipeline_mode = #tpu.pipeline_mode<synchronous>, transform_indices = @transform_2, window_bounds = array<i64: 16, 512>}, {pipeline_mode = #tpu.pipeline_mode<synchronous>, transform_indices = @transform_3, window_bounds = array<i64: 1, 512>}, {pipeline_mode = #tpu.pipeline_mode<synchronous>, transform_indices = @transform_4, window_bounds = array<i64: 512, 384>}, {pipeline_mode = #tpu.pipeline_mode<synchronous>, transform_indices = @transform_5, window_bounds = array<i64: 4, 384>}, {pipeline_mode = #tpu.pipeline_mode<synchronous>, transform_indices = @transform_6, window_bounds = array<i64: 1, 384>}, {pipeline_mode = #tpu.pipeline_mode<synchronous>, transform_indices = @transform_7, window_bounds = array<i64: 1, 384>}, {pipeline_mode = #tpu.pipeline_mode<synchronous>, transform_indices = @transform_8, window_bounds = array<i64: 1, 1>}, {transform_indices = @transform_9, window_bounds = array<i64: 8, 1>}]} {
    %c0 = arith.constant 0 : index
    %c0_0 = arith.constant 0 : index
    %0 = vector.load %arg1[%c0, %c0_0] : memref<8x16xf32, #tpu.memory_space<vmem>>, vector<8x16xf32>
    %c0_1 = arith.constant 0 : index
    %c0_2 = arith.constant 0 : index
    %1 = vector.load %arg3[%c0_1, %c0_2] : memref<16x512xf32, #tpu.memory_space<vmem>>, vector<16x512xf32>
    %cst = arith.constant dense<0.000000e+00> : vector<8x512xf32>
    %2 = tpu.matmul %0, %1, %cst {dimension_numbers = #tpu.dot_dimension_numbers<[1], [0], [0], [1], [0, 0, 1, 1], [], []>} : vector<8x16xf32>, vector<16x512xf32>, vector<8x512xf32> -> vector<8x512xf32>
    %c0_3 = arith.constant 0 : index
    %c0_4 = arith.constant 0 : index
    %3 = vector.load %arg4[%c0_3, %c0_4] : memref<1x512xf32, #tpu.memory_space<vmem>>, vector<1x512xf32>
    %4 = vector.broadcast %3 : vector<1x512xf32> to vector<8x512xf32>
    %5 = arith.addf %2, %4 : vector<8x512xf32>
    %cst_5 = arith.constant 0.000000e+00 : f32
    %6 = vector.broadcast %cst_5 : f32 to vector<8x512xf32>
    %7 = arith.maximumf %5, %6 : vector<8x512xf32>
    %c0_6 = arith.constant 0 : index
    %c0_7 = arith.constant 0 : index
    %8 = vector.load %arg2[%c0_6, %c0_7] : memref<8x4xf32, #tpu.memory_space<vmem>>, vector<8x4xf32>
    %c0_8 = arith.constant 0 : index
    %c0_9 = arith.constant 0 : index
    %9 = vector.load %arg6[%c0_8, %c0_9] : memref<4x384xf32, #tpu.memory_space<vmem>>, vector<4x384xf32>
    %cst_10 = arith.constant dense<0.000000e+00> : vector<8x384xf32>
    %10 = tpu.matmul %8, %9, %cst_10 {dimension_numbers = #tpu.dot_dimension_numbers<[1], [0], [0], [1], [0, 0, 1, 1], [], []>} : vector<8x4xf32>, vector<4x384xf32>, vector<8x384xf32> -> vector<8x384xf32>
    %c0_11 = arith.constant 0 : index
    %c0_12 = arith.constant 0 : index
    %11 = vector.load %arg7[%c0_11, %c0_12] : memref<1x384xf32, #tpu.memory_space<vmem>>, vector<1x384xf32>
    %12 = vector.broadcast %11 : vector<1x384xf32> to vector<8x384xf32>
    %13 = arith.addf %10, %12 : vector<8x384xf32>
    %c0_13 = arith.constant 0 : index
    %c0_14 = arith.constant 0 : index
    %14 = vector.load %arg5[%c0_13, %c0_14] : memref<512x384xf32, #tpu.memory_space<vmem>>, vector<512x384xf32>
    %cst_15 = arith.constant dense<0.000000e+00> : vector<8x384xf32>
    %15 = tpu.matmul %7, %14, %cst_15 {dimension_numbers = #tpu.dot_dimension_numbers<[1], [0], [0], [1], [0, 0, 1, 1], [], []>} : vector<8x512xf32>, vector<512x384xf32>, vector<8x384xf32> -> vector<8x384xf32>
    %16 = arith.addf %15, %13 : vector<8x384xf32>
    %cst_16 = arith.constant 0.000000e+00 : f32
    %17 = vector.broadcast %cst_16 : f32 to vector<8x384xf32>
    %18 = arith.maximumf %16, %17 : vector<8x384xf32>
    %c0_17 = arith.constant 0 : index
    %c0_18 = arith.constant 0 : index
    %19 = vector.load %arg8[%c0_17, %c0_18] : memref<1x384xf32, #tpu.memory_space<vmem>>, vector<1x384xf32>
    %20 = vector.broadcast %19 : vector<1x384xf32> to vector<8x384xf32>
    %21 = arith.mulf %18, %20 : vector<8x384xf32>
    %cst_19 = arith.constant dense<0.000000e+00> : vector<8xf32>
    %22 = vector.multi_reduction <add>, %21, %cst_19 [1] : vector<8x384xf32> to vector<8xf32>
    %23 = vector.shape_cast %22 : vector<8xf32> to vector<8x1xf32>
    %c0_20 = arith.constant 0 : index
    %c0_21 = arith.constant 0 : index
    %24 = vector.load %arg9[%c0_20, %c0_21] : memref<1x1xf32, #tpu.memory_space<vmem>>, vector<1x1xf32>
    %25 = vector.broadcast %24 : vector<1x1xf32> to vector<8x1xf32>
    %26 = arith.addf %23, %25 : vector<8x1xf32>
    %c0_22 = arith.constant 0 : index
    %c0_23 = arith.constant 0 : index
    %27 = vector.load %arg10[%c0_22, %c0_23] : memref<8x1xf32, #tpu.memory_space<vmem>>, vector<8x1xf32>
    tpu.vector_store %arg10[%c0_22, %c0_23], %26 {strides = array<i32>} : memref<8x1xf32, #tpu.memory_space<vmem>>, vector<8x1xf32>,
    return
  }
  func.func @transform_0(%arg0: i32) -> (i32, i32) {
    %c0_i32 = arith.constant 0 : i32
    %c0_i32_0 = arith.constant 0 : i32
    return %arg0, %c0_i32 : i32, i32
  }
  func.func @transform_1(%arg0: i32) -> (i32, i32) {
    %c0_i32 = arith.constant 0 : i32
    %c0_i32_0 = arith.constant 0 : i32
    return %arg0, %c0_i32 : i32, i32
  }
  func.func @transform_2(%arg0: i32) -> (i32, i32) {
    %c0_i32 = arith.constant 0 : i32
    %c0_i32_0 = arith.constant 0 : i32
    %c0_i32_1 = arith.constant 0 : i32
    return %c0_i32, %c0_i32_0 : i32, i32
  }
  func.func @transform_3(%arg0: i32) -> (i32, i32) {
    %c0_i32 = arith.constant 0 : i32
    %c0_i32_0 = arith.constant 0 : i32
    %c0_i32_1 = arith.constant 0 : i32
    return %c0_i32, %c0_i32_0 : i32, i32
  }
  func.func @transform_4(%arg0: i32) -> (i32, i32) {
    %c0_i32 = arith.constant 0 : i32
    %c0_i32_0 = arith.constant 0 : i32
    %c0_i32_1 = arith.constant 0 : i32
    return %c0_i32, %c0_i32_0 : i32, i32
  }
  func.func @transform_5(%arg0: i32) -> (i32, i32) {
    %c0_i32 = arith.constant 0 : i32
    %c0_i32_0 = arith.constant 0 : i32
    %c0_i32_1 = arith.constant 0 : i32
    return %c0_i32, %c0_i32_0 : i32, i32
  }
  func.func @transform_6(%arg0: i32) -> (i32, i32) {
    %c0_i32 = arith.constant 0 : i32
    %c0_i32_0 = arith.constant 0 : i32
    %c0_i32_1 = arith.constant 0 : i32
    return %c0_i32, %c0_i32_0 : i32, i32
  }
  func.func @transform_7(%arg0: i32) -> (i32, i32) {
    %c0_i32 = arith.constant 0 : i32
    %c0_i32_0 = arith.constant 0 : i32
    %c0_i32_1 = arith.constant 0 : i32
    return %c0_i32, %c0_i32_0 : i32, i32
  }
  func.func @transform_8(%arg0: i32) -> (i32, i32) {
    %c0_i32 = arith.constant 0 : i32
    %c0_i32_0 = arith.constant 0 : i32
    %c0_i32_1 = arith.constant 0 : i32
    return %c0_i32, %c0_i32_0 : i32, i32
  }
  func.func @transform_9(%arg0: i32) -> (i32, i32) {
    %c0_i32 = arith.constant 0 : i32
    %c0_i32_0 = arith.constant 0 : i32
    return %arg0, %c0_i32 : i32, i32
  }
}

</mosaic_0001>

<llo_original>
// kernel: critic_forward.1
$region0: #{critic_forward.1}
  #allocation0 [shape = 'u32[]', space=smem, size = 0x4, offset = 0x4, fixed_abs, tag = 'smem constant byte address 0x4 - core index']
  #allocation1 [shape = 'u32[144,128]{1,0:T(1,128)}', space=vmem, size = 0x12000, scoped, tag = 'internal scratch']
  #allocation2 [shape = 'f32[1,1]{1,0:T(1,128)S(1)}', space=vmem, size = 0x200, scoped, tag = 'scoped memory for critic_forward.1']
  %s0 = inlined_call_operand.vmem [shape: f32[8,16], index: 0, kind: input, shape index: {}]
  %s1 = inlined_call_operand.vmem [shape: f32[8,4], index: 1, kind: input, shape index: {}]
  %s2 = inlined_call_operand.hbm [shape: f32[16,512], index: 2, kind: input, shape index: {}]
  %s3 = inlined_call_operand.vmem [shape: f32[1,512], index: 3, kind: input, shape index: {}]
  %s4 = inlined_call_operand.hbm [shape: f32[512,384], index: 4, kind: input, shape index: {}]
  %s5 = inlined_call_operand.vmem [shape: f32[4,384], index: 5, kind: input, shape index: {}]
  %s6 = inlined_call_operand.vmem [shape: f32[1,384], index: 6, kind: input, shape index: {}]
  %s7 = inlined_call_operand.vmem [shape: f32[1,384], index: 7, kind: input, shape index: {}]
  %s8 = inlined_call_operand.<no memory space> [shape: f32[1,1], index: 8, kind: input, shape index: {}]
  %s9 = inlined_call_operand.vmem [shape: f32[8,1], index: 9, kind: output, shape index: {}]
  %s10 = sld [smem:[#allocation0]]
  $region54: #{critic_forward.1} parent=0
    _
  %s12 = ssub.s32 1, %s10
  %s13 = scalar_select 0, %s12, %s10
  %v14 = vstv %s8
  %15 = vst [vmem:[#allocation2] sm:$0x1] %v14
  $region1: #{critic_forward.1} parent=0
    #allocation3 [shape = 'u8[32768]{0}', space=vmem, size = 0x8000, scoped, tag = 'input window, operand 2, single buffered']
    #allocation4 [shape = 's32[1]{0}', space=sflag, size = 0x4, scoped, tag = 'scoped memory for critic_forward.1']
    #allocation5 [shape = 'u8[786432]{0}', space=vmem, size = 0xc0000, scoped, tag = 'input window, operand 4, single buffered']
    #allocation6 [shape = 's32[1]{0}', space=sflag, size = 0x4, scoped, tag = 'scoped memory for critic_forward.1']
    %16 = vsyncpa [#allocation4], 0
    %17 = vsyncpa [#allocation6], 0
    // Predicated region
    $region2: #{critic_forward.1} parent=1 // pred_check
      _
    $region3: #{critic_forward.1} parent=1 // pred_check_branch
      %19 = sbr.rel (0) target = $region5
    $region4: #{critic_forward.1} parent=1 // pred_region
      _
    $region5: #{critic_forward.1} parent=1 // pred_fallthru
      _
    // Predicated region
    $region6: #{critic_forward.1} parent=1 // pred_check
      _
    $region7: #{critic_forward.1} parent=1 // pred_check_branch
      %21 = sbr.rel (0) target = $region9
    $region8: #{critic_forward.1} parent=1 // pred_region
      _
    $region9: #{critic_forward.1} parent=1 // pred_fallthru
      _
    // Predicated region
    $region10: #{critic_forward.1} parent=1 // pred_check
      _
    $region11: #{critic_forward.1} parent=1 // pred_check_branch
      %23 = sbr.rel (0) target = $region13
    $region12: #{critic_forward.1} parent=1 // pred_region
      %s25 = ssub.s32 1024, 1024
      %26 = vsyncadd [#allocation4], %s25
      %s27 = sshll.u32 [#allocation3], 4
      %s28 = int_to_ptr.vmem [resolvable:$true] %s27
      %33 = dma.hbm_to_vmem [thread:$0]  %s2, 1024, %s28, [#allocation4], 512, 512, 32
    $region13: #{critic_forward.1} parent=1 // pred_fallthru
      _
    // Predicated region
    $region14: #{critic_forward.1} parent=1 // pred_check
      _
    $region15: #{critic_forward.1} parent=1 // pred_check_branch
      %35 = sbr.rel (0) target = $region17
    $region16: #{critic_forward.1} parent=1 // pred_region
      _
    $region17: #{critic_forward.1} parent=1 // pred_fallthru
      _
    // Predicated region
    $region18: #{critic_forward.1} parent=1 // pred_check
      _
    $region19: #{critic_forward.1} parent=1 // pred_check_branch
      %37 = sbr.rel (0) target = $region21
    $region20: #{critic_forward.1} parent=1 // pred_region
      %s39 = ssub.s32 24576, 24576
      %40 = vsyncadd [#allocation6], %s39
      %s41 = sshll.u32 [#allocation5], 4
      %s42 = int_to_ptr.vmem [resolvable:$true] %s41
      %47 = dma.hbm_to_vmem [thread:$0]  %s4, 24576, %s42, [#allocation6], 384, 384, 24
    $region21: #{critic_forward.1} parent=1 // pred_fallthru
      _
    // Predicated region
    $region22: #{critic_forward.1} parent=1 // pred_check
      _
    $region23: #{critic_forward.1} parent=1 // pred_check_branch
      %49 = sbr.rel (0) target = $region25
    $region24: #{critic_forward.1} parent=1 // pred_region
      _
    $region25: #{critic_forward.1} parent=1 // pred_fallthru
      _
    // Predicated region
    $region26: #{critic_forward.1} parent=1 // pred_check
      _
    $region27: #{critic_forward.1} parent=1 // pred_check_branch
      %51 = sbr.rel (0) target = $region29
    $region28: #{critic_forward.1} parent=1 // pred_region
      _
    $region29: #{critic_forward.1} parent=1 // pred_fallthru
      _
    // Predicated region
    $region30: #{critic_forward.1} parent=1 // pred_check
      _
    $region31: #{critic_forward.1} parent=1 // pred_check_branch
      %53 = sbr.rel (0) target = $region33
    $region32: #{critic_forward.1} parent=1 // pred_region
      _
    $region33: #{critic_forward.1} parent=1 // pred_fallthru
      _
    // Predicated region
    $region34: #{critic_forward.1} parent=1 // pred_check
      _
    $region35: #{critic_forward.1} parent=1 // pred_check_branch
      %55 = sbr.rel (0) target = $region37
    $region36: #{critic_forward.1} parent=1 // pred_region
      _
    $region37: #{critic_forward.1} parent=1 // pred_fallthru
      _
    // Predicated region
    $region38: #{critic_forward.1} parent=1 // pred_check
      _
    $region39: #{critic_forward.1} parent=1 // pred_check_branch
      %57 = sbr.rel (0) target = $region41
    $region40: #{critic_forward.1} parent=1 // pred_region
      %58 = dma.done [#allocation4], 1024
    $region41: #{critic_forward.1} parent=1 // pred_fallthru
      _
    // Predicated region
    $region42: #{critic_forward.1} parent=1 // pred_check
      _
    $region43: #{critic_forward.1} parent=1 // pred_check_branch
      %60 = sbr.rel (0) target = $region45
    $region44: #{critic_forward.1} parent=1 // pred_region
      %61 = dma.done [#allocation6], 24576
    $region45: #{critic_forward.1} parent=1 // pred_fallthru
      _
    %v62 = vld [vmem:[%s0] sm:$0xff]
    %v63 = vld [vmem:[#allocation3] sm:$0xff]
    %v64 = vld [vmem:[#allocation3 + $0x8] sm:$0xff]
    %v65 = vld [vmem:[#allocation3 + $0x10] sm:$0xff]
    %v66 = vld [vmem:[#allocation3 + $0x18] sm:$0xff]
    %v67 = vld [vmem:[#allocation3 + $0x20] sm:$0xff]
    %v68 = vld [vmem:[#allocation3 + $0x28] sm:$0xff]
    %v69 = vld [vmem:[#allocation3 + $0x30] sm:$0xff]
    %v70 = vld [vmem:[#allocation3 + $0x38] sm:$0xff]
    %v71 = vld [vmem:[%s3] sm:$0xf]
    %v73 = vlaneseq
    %v74 = vshrl.u32 %v73, 7
    %v75 = vsub.s32 0, %v74
    %v76 = vrot.slane %v71, %v75
    %v77 = vlaneseq
    %v78 = vshrl.u32 %v77, 7
    %v79 = vsub.s32 1, %v78
    %v80 = vrot.slane %v71, %v79
    %v81 = vlaneseq
    %v82 = vshrl.u32 %v81, 7
    %v83 = vsub.s32 2, %v82
    %v84 = vrot.slane %v71, %v83
    %v85 = vlaneseq
    %v86 = vshrl.u32 %v85, 7
    %v87 = vsub.s32 3, %v86
    %v88 = vrot.slane %v71, %v87
    %vm93 = vcmask 130048
    %v95 = vsel %vm93, %v62, 0
    %97 = vmatprep.subr.mxu0 0.0
    %98 = vmatpush1.msra.mxu0 0.0
    %99 = vmatprep.subr.mxu0 0.0
    %100 = vmatpush1.msra.mxu0 0.0
    %101 = vmatprep.subr.mxu0 0.0
    %102 = vmatpush1.msra.mxu0 0.0
    %103 = vmatprep.subr.mxu0 0.0
    %104 = vmatpush1.msra.mxu0 0.0
    %105 = vmatprep.subr.mxu0 0.0
    %106 = vmatpush1.msra.mxu0 0.0
    %107 = vmatprep.subr.mxu0 0.0
    %108 = vmatpush1.msra.mxu0 0.0
    %109 = vmatprep.subr.mxu0 0.0
    %110 = vmatpush1.msra.mxu0 0.0
    %111 = vmatprep.subr.mxu0 0.0
    %112 = vmatpush1.msra.mxu0 0.0
    %113 = vmatprep.subr.mxu0 0.0
    %114 = vmatpush1.msra.mxu0 0.0
    %115 = vmatprep.subr.mxu0 0.0
    %116 = vmatpush1.msra.mxu0 0.0
    %117 = vmatprep.subr.mxu0 0.0
    %118 = vmatpush1.msra.mxu0 0.0
    %119 = vmatprep.subr.mxu0 0.0
    %120 = vmatpush1.msra.mxu0 0.0
    %121 = vmatprep.subr.mxu0 0.0
    %122 = vmatpush1.msra.mxu0 0.0
    %123 = vmatprep.subr.mxu0 0.0
    %124 = vmatpush1.msra.mxu0 0.0
    %125 = vmatprep.subr.mxu0 %v68
    %126 = vmatpush1.msra.mxu0 %v67
    %127 = vmatprep.subr.mxu0 %v64
    %128 = vmatpush1.msra.mxu0 %v63
    %129 = vmatprep.subr.mxu0 0.0
    %130 = vmatpush2.msra.mxu0 0.0
    %131 = vmatprep.subr.mxu0 0.0
    %132 = vmatpush2.msra.mxu0 0.0
    %133 = vmatprep.subr.mxu0 0.0
    %134 = vmatpush2.msra.mxu0 0.0
    %135 = vmatprep.subr.mxu0 0.0
    %136 = vmatpush2.msra.mxu0 0.0
    %137 = vmatprep.subr.mxu0 0.0
    %138 = vmatpush2.msra.mxu0 0.0
    %139 = vmatprep.subr.mxu0 0.0
    %140 = vmatpush2.msra.mxu0 0.0
    %141 = vmatprep.subr.mxu0 0.0
    %142 = vmatpush2.msra.mxu0 0.0
    %143 = vmatprep.subr.mxu0 0.0
    %144 = vmatpush2.msra.mxu0 0.0
    %145 = vmatprep.subr.mxu0 0.0
    %146 = vmatpush2.msra.mxu0 0.0
    %147 = vmatprep.subr.mxu0 0.0
    %148 = vmatpush2.msra.mxu0 0.0
    %149 = vmatprep.subr.mxu0 0.0
    %150 = vmatpush2.msra.mxu0 0.0
    %151 = vmatprep.subr.mxu0 0.0
    %152 = vmatpush2.msra.mxu0 0.0
    %153 = vmatprep.subr.mxu0 0.0
    %154 = vmatpush2.msra.mxu0 0.0
    %155 = vmatprep.subr.mxu0 0.0
    %156 = vmatpush2.msra.mxu0 0.0
    %157 = vmatprep.subr.mxu0 0.0
    %158 = vmatpush2.msra.mxu0 0.0
    %159 = vmatprep.subr.mxu0 0.0
    %160 = vmatpush2.msra.mxu0 0.0
    %161 = vmatprep.mubr.f32.mxu0 0.0
    %162 = vmatmul.mubr.f32.gmra.mxu0 %v95
    %v163 = vpop.f32.mrf.mxu0
    %v164 = vadd.f32 %v76, %v163
    %v165 = vpop.f32.mrf.mxu0
    %v166 = vadd.f32 %v80, %v165
    %167 = vdwg.mxu0
    %168 = vmatprep.subr.mxu0 0.0
    %169 = vmatpush1.msra.mxu0 0.0
    %170 = vmatprep.subr.mxu0 0.0
    %171 = vmatpush1.msra.mxu0 0.0
    %172 = vmatprep.subr.mxu0 0.0
    %173 = vmatpush1.msra.mxu0 0.0
    %174 = vmatprep.subr.mxu0 0.0
    %175 = vmatpush1.msra.mxu0 0.0
    %176 = vmatprep.subr.mxu0 0.0
    %177 = vmatpush1.msra.mxu0 0.0
    %178 = vmatprep.subr.mxu0 0.0
    %179 = vmatpush1.msra.mxu0 0.0
    %180 = vmatprep.subr.mxu0 0.0
    %181 = vmatpush1.msra.mxu0 0.0
    %182 = vmatprep.subr.mxu0 0.0
    %183 = vmatpush1.msra.mxu0 0.0
    %184 = vmatprep.subr.mxu0 0.0
    %185 = vmatpush1.msra.mxu0 0.0
    %186 = vmatprep.subr.mxu0 0.0
    %187 = vmatpush1.msra.mxu0 0.0
    %188 = vmatprep.subr.mxu0 0.0
    %189 = vmatpush1.msra.mxu0 0.0
    %190 = vmatprep.subr.mxu0 0.0
    %191 = vmatpush1.msra.mxu0 0.0
    %192 = vmatprep.subr.mxu0 0.0
    %193 = vmatpush1.msra.mxu0 0.0
    %194 = vmatprep.subr.mxu0 0.0
    %195 = vmatpush1.msra.mxu0 0.0
    %196 = vmatprep.subr.mxu0 %v70
    %197 = vmatpush1.msra.mxu0 %v69
    %198 = vmatprep.subr.mxu0 %v66
    %199 = vmatpush1.msra.mxu0 %v65
    %200 = vmatprep.subr.mxu0 0.0
    %201 = vmatpush2.msra.mxu0 0.0
    %202 = vmatprep.subr.mxu0 0.0
    %203 = vmatpush2.msra.mxu0 0.0
    %204 = vmatprep.subr.mxu0 0.0
    %205 = vmatpush2.msra.mxu0 0.0
    %206 = vmatprep.subr.mxu0 0.0
    %207 = vmatpush2.msra.mxu0 0.0
    %208 = vmatprep.subr.mxu0 0.0
    %209 = vmatpush2.msra.mxu0 0.0
    %210 = vmatprep.subr.mxu0 0.0
    %211 = vmatpush2.msra.mxu0 0.0
    %212 = vmatprep.subr.mxu0 0.0
    %213 = vmatpush2.msra.mxu0 0.0
    %214 = vmatprep.subr.mxu0 0.0
    %215 = vmatpush2.msra.mxu0 0.0
    %216 = vmatprep.subr.mxu0 0.0
    %217 = vmatpush2.msra.mxu0 0.0
    %218 = vmatprep.subr.mxu0 0.0
    %219 = vmatpush2.msra.mxu0 0.0
    %220 = vmatprep.subr.mxu0 0.0
    %221 = vmatpush2.msra.mxu0 0.0
    %222 = vmatprep.subr.mxu0 0.0
    %223 = vmatpush2.msra.mxu0 0.0
    %224 = vmatprep.subr.mxu0 0.0
    %225 = vmatpush2.msra.mxu0 0.0
    %226 = vmatprep.subr.mxu0 0.0
    %227 = vmatpush2.msra.mxu0 0.0
    %228 = vmatprep.subr.mxu0 0.0
    %229 = vmatpush2.msra.mxu0 0.0
    %230 = vmatprep.subr.mxu0 0.0
    %231 = vmatpush2.msra.mxu0 0.0
    %232 = vmatprep.mubr.f32.mxu0 0.0
    %233 = vmatmul.mubr.f32.gmra.mxu0 %v95
    %v234 = vpop.f32.mrf.mxu0
    %v235 = vadd.f32 %v84, %v234
    %v236 = vpop.f32.mrf.mxu0
    %v237 = vadd.f32 %v88, %v236
    %238 = vdwg.mxu0
    %v239 = vmax.f32 %v164, 0.0
    %v240 = vmax.f32 %v166, 0.0
    %v241 = vmax.f32 %v235, 0.0
    %v242 = vmax.f32 %v237, 0.0
    %v243 = vld [vmem:[%s1] sm:$0xff]
    %v244 = vld [vmem:[%s5] sm:$0xff]
    %v245 = vld [vmem:[%s5 + $0x8] sm:$0xf]
    %v246 = vld [vmem:[%s6] sm:$0x7]
    %v248 = vlaneseq
    %v249 = vshrl.u32 %v248, 7
    %v250 = vsub.s32 0, %v249
    %v251 = vrot.slane %v246, %v250
    %v252 = vlaneseq
    %v253 = vshrl.u32 %v252, 7
    %v254 = vsub.s32 1, %v253
    %v255 = vrot.slane %v246, %v254
    %v256 = vlaneseq
    %v257 = vshrl.u32 %v256, 7
    %v258 = vsub.s32 2, %v257
    %v259 = vrot.slane %v246, %v258
    %v265 = vcombine.high %v244, %v244
    %vm266 = vcmask 31744
    %v268 = vsel %vm266, %v243, 0
    %vm270 = vcmask 1043456
    %v271 = vsel %vm270, %v244, 0
    %v273 = vsel %vm270, %v265, 0
    %v275 = vsel %vm270, %v245, 0
    %277 = vmatprep.subr.mxu0 0.0
    %278 = vmatpush1.msra.mxu0 0.0
    %279 = vmatprep.subr.mxu0 0.0
    %280 = vmatpush1.msra.mxu0 0.0
    %281 = vmatprep.subr.mxu0 0.0
    %282 = vmatpush1.msra.mxu0 0.0
    %283 = vmatprep.subr.mxu0 0.0
    %284 = vmatpush1.msra.mxu0 0.0
    %285 = vmatprep.subr.mxu0 0.0
    %286 = vmatpush1.msra.mxu0 0.0
    %287 = vmatprep.subr.mxu0 0.0
    %288 = vmatpush1.msra.mxu0 0.0
    %289 = vmatprep.subr.mxu0 0.0
    %290 = vmatpush1.msra.mxu0 0.0
    %291 = vmatprep.subr.mxu0 0.0
    %292 = vmatpush1.msra.mxu0 0.0
    %293 = vmatprep.subr.mxu0 0.0
    %294 = vmatpush1.msra.mxu0 0.0
    %295 = vmatprep.subr.mxu0 0.0
    %296 = vmatpush1.msra.mxu0 0.0
    %297 = vmatprep.subr.mxu0 0.0
    %298 = vmatpush1.msra.mxu0 0.0
    %299 = vmatprep.subr.mxu0 0.0
    %300 = vmatpush1.msra.mxu0 0.0
    %301 = vmatprep.subr.mxu0 0.0
    %302 = vmatpush1.msra.mxu0 0.0
    %303 = vmatprep.subr.mxu0 0.0
    %304 = vmatpush1.msra.mxu0 0.0
    %305 = vmatprep.subr.mxu0 0.0
    %306 = vmatpush1.msra.mxu0 0.0
    %307 = vmatprep.subr.mxu0 %v273
    %308 = vmatpush1.msra.mxu0 %v271
    %309 = vmatprep.subr.mxu0 0.0
    %310 = vmatpush2.msra.mxu0 0.0
    %311 = vmatprep.subr.mxu0 0.0
    %312 = vmatpush2.msra.mxu0 0.0
    %313 = vmatprep.subr.mxu0 0.0
    %314 = vmatpush2.msra.mxu0 0.0
    %315 = vmatprep.subr.mxu0 0.0
    %316 = vmatpush2.msra.mxu0 0.0
    %317 = vmatprep.subr.mxu0 0.0
    %318 = vmatpush2.msra.mxu0 0.0
    %319 = vmatprep.subr.mxu0 0.0
    %320 = vmatpush2.msra.mxu0 0.0
    %321 = vmatprep.subr.mxu0 0.0
    %322 = vmatpush2.msra.mxu0 0.0
    %323 = vmatprep.subr.mxu0 0.0
    %324 = vmatpush2.msra.mxu0 0.0
    %325 = vmatprep.subr.mxu0 0.0
    %326 = vmatpush2.msra.mxu0 0.0
    %327 = vmatprep.subr.mxu0 0.0
    %328 = vmatpush2.msra.mxu0 0.0
    %329 = vmatprep.subr.mxu0 0.0
    %330 = vmatpush2.msra.mxu0 0.0
    %331 = vmatprep.subr.mxu0 0.0
    %332 = vmatpush2.msra.mxu0 0.0
    %333 = vmatprep.subr.mxu0 0.0
    %334 = vmatpush2.msra.mxu0 0.0
    %335 = vmatprep.subr.mxu0 0.0
    %336 = vmatpush2.msra.mxu0 0.0
    %337 = vmatprep.subr.mxu0 0.0
    %338 = vmatpush2.msra.mxu0 0.0
    %339 = vmatprep.subr.mxu0 0.0
    %340 = vmatpush2.msra.mxu0 0.0
    %341 = vmatprep.mubr.f32.mxu0 0.0
    %342 = vmatmul.mubr.f32.gmra.mxu0 %v268
    %v343 = vpop.f32.mrf.mxu0
    %v344 = vadd.f32 %v251, %v343
    %v345 = vpop.f32.mrf.mxu0
    %v346 = vadd.f32 %v255, %v345
    %347 = vdwg.mxu0
    %348 = vmatprep.subr.mxu0 0.0
    %349 = vmatpush1.msra.mxu0 0.0
    %350 = vmatprep.subr.mxu0 0.0
    %351 = vmatpush1.msra.mxu0 0.0
    %352 = vmatprep.subr.mxu0 0.0
    %353 = vmatpush1.msra.mxu0 0.0
    %354 = vmatprep.subr.mxu0 0.0
    %355 = vmatpush1.msra.mxu0 0.0
    %356 = vmatprep.subr.mxu0 0.0
    %357 = vmatpush1.msra.mxu0 0.0
    %358 = vmatprep.subr.mxu0 0.0
    %359 = vmatpush1.msra.mxu0 0.0
    %360 = vmatprep.subr.mxu0 0.0
    %361 = vmatpush1.msra.mxu0 0.0
    %362 = vmatprep.subr.mxu0 0.0
    %363 = vmatpush1.msra.mxu0 0.0
    %364 = vmatprep.subr.mxu0 0.0
    %365 = vmatpush1.msra.mxu0 0.0
    %366 = vmatprep.subr.mxu0 0.0
    %367 = vmatpush1.msra.mxu0 0.0
    %368 = vmatprep.subr.mxu0 0.0
    %369 = vmatpush1.msra.mxu0 0.0
    %370 = vmatprep.subr.mxu0 0.0
    %371 = vmatpush1.msra.mxu0 0.0
    %372 = vmatprep.subr.mxu0 0.0
    %373 = vmatpush1.msra.mxu0 0.0
    %374 = vmatprep.subr.mxu0 0.0
    %375 = vmatpush1.msra.mxu0 0.0
    %376 = vmatprep.subr.mxu0 0.0
    %377 = vmatpush1.msra.mxu0 0.0
    %378 = vmatprep.subr.mxu0 0.0
    %379 = vmatpush1.msra.mxu0 %v275
    %380 = vmatprep.subr.mxu0 0.0
    %381 = vmatpush2.msra.mxu0 0.0
    %382 = vmatprep.subr.mxu0 0.0
    %383 = vmatpush2.msra.mxu0 0.0
    %384 = vmatprep.subr.mxu0 0.0
    %385 = vmatpush2.msra.mxu0 0.0
    %386 = vmatprep.subr.mxu0 0.0
    %387 = vmatpush2.msra.mxu0 0.0
    %388 = vmatprep.subr.mxu0 0.0
    %389 = vmatpush2.msra.mxu0 0.0
    %390 = vmatprep.subr.mxu0 0.0
    %391 = vmatpush2.msra.mxu0 0.0
    %392 = vmatprep.subr.mxu0 0.0
    %393 = vmatpush2.msra.mxu0 0.0
    %394 = vmatprep.subr.mxu0 0.0
    %395 = vmatpush2.msra.mxu0 0.0
    %396 = vmatprep.subr.mxu0 0.0
    %397 = vmatpush2.msra.mxu0 0.0
    %398 = vmatprep.subr.mxu0 0.0
    %399 = vmatpush2.msra.mxu0 0.0
    %400 = vmatprep.subr.mxu0 0.0
    %401 = vmatpush2.msra.mxu0 0.0
    %402 = vmatprep.subr.mxu0 0.0
    %403 = vmatpush2.msra.mxu0 0.0
    %404 = vmatprep.subr.mxu0 0.0
    %405 = vmatpush2.msra.mxu0 0.0
    %406 = vmatprep.subr.mxu0 0.0
    %407 = vmatpush2.msra.mxu0 0.0
    %408 = vmatprep.subr.mxu0 0.0
    %409 = vmatpush2.msra.mxu0 0.0
    %410 = vmatprep.subr.mxu0 0.0
    %411 = vmatpush2.msra.mxu0 0.0
    %412 = vmatprep.mubr.f32.mxu0 0.0
    %413 = vmatmul.mubr.f32.gmra.mxu0 %v268
    %v414 = vpop.f32.mrf.mxu0
    %v415 = vadd.f32 %v259, %v414
    %v416 = vpop.f32.mrf.mxu0
    %417 = vdwg.mxu0
    %v418 = vld [vmem:[#allocation5] sm:$0xff]
    %v419 = vld [vmem:[#allocation5 + $0x8] sm:$0xff]
    %v420 = vld [vmem:[#allocation5 + $0x10] sm:$0xff]
    %v421 = vld [vmem:[#allocation5 + $0x18] sm:$0xff]
    %v422 = vld [vmem:[#allocation5 + $0x20] sm:$0xff]
    %v423 = vld [vmem:[#allocation5 + $0x28] sm:$0xff]
    %v424 = vld [vmem:[#allocation5 + $0x30] sm:$0xff]
    %v425 = vld [vmem:[#allocation5 + $0x38] sm:$0xff]
    %v426 = vld [vmem:[#allocation5 + $0x40] sm:$0xff]
    %v427 = vld [vmem:[#allocation5 + $0x48] sm:$0xff]
    %v428 = vld [vmem:[#allocation5 + $0x50] sm:$0xff]
    %v429 = vld [vmem:[#allocation5 + $0x58] sm:$0xff]
    %v430 = vld [vmem:[#allocation5 + $0x60] sm:$0xff]
    %v431 = vld [vmem:[#allocation5 + $0x68] sm:$0xff]
    %v432 = vld [vmem:[#allocation5 + $0x70] sm:$0xff]
    %v433 = vld [vmem:[#allocation5 + $0x78] sm:$0xff]
    %v434 = vld [vmem:[#allocation5 + $0x80] sm:$0xff]
    %v435 = vld [vmem:[#allocation5 + $0x88] sm:$0xff]
    %v436 = vld [vmem:[#allocation5 + $0x90] sm:$0xff]
    %v437 = vld [vmem:[#allocation5 + $0x98] sm:$0xff]
    %v438 = vld [vmem:[#allocation5 + $0xa0] sm:$0xff]
    %v439 = vld [vmem:[#allocation5 + $0xa8] sm:$0xff]
    %v440 = vld [vmem:[#allocation5 + $0xb0] sm:$0xff]
    %v441 = vld [vmem:[#allocation5 + $0xb8] sm:$0xff]
    %v442 = vld [vmem:[#allocation5 + $0xc0] sm:$0xff]
    %v443 = vld [vmem:[#allocation5 + $0xc8] sm:$0xff]
    %v444 = vld [vmem:[#allocation5 + $0xd0] sm:$0xff]
    %v445 = vld [vmem:[#allocation5 + $0xd8] sm:$0xff]
    %v446 = vld [vmem:[#allocation5 + $0xe0] sm:$0xff]
    %v447 = vld [vmem:[#allocation5 + $0xe8] sm:$0xff]
    %v448 = vld [vmem:[#allocation5 + $0xf0] sm:$0xff]
    %v449 = vld [vmem:[#allocation5 + $0xf8] sm:$0xff]
    %v450 = vld [vmem:[#allocation5 + $0x100] sm:$0xff]
    %v451 = vld [vmem:[#allocation5 + $0x108] sm:$0xff]
    %v452 = vld [vmem:[#allocation5 + $0x110] sm:$0xff]
    %v453 = vld [vmem:[#allocation5 + $0x118] sm:$0xff]
    %v454 = vld [vmem:[#allocation5 + $0x120] sm:$0xff]
    %v455 = vld [vmem:[#allocation5 + $0x128] sm:$0xff]
    %v456 = vld [vmem:[#allocation5 + $0x130] sm:$0xff]
    %v457 = vld [vmem:[#allocation5 + $0x138] sm:$0xff]
    %v458 = vld [vmem:[#allocation5 + $0x140] sm:$0xff]
    %v459 = vld [vmem:[#allocation5 + $0x148] sm:$0xff]
    %v460 = vld [vmem:[#allocation5 + $0x150] sm:$0xff]
    %v461 = vld [vmem:[#allocation5 + $0x158] sm:$0xff]
    %v462 = vld [vmem:[#allocation5 + $0x160] sm:$0xff]
    %v463 = vld [vmem:[#allocation5 + $0x168] sm:$0xff]
    %v464 = vld [vmem:[#allocation5 + $0x170] sm:$0xff]
    %v465 = vld [vmem:[#allocation5 + $0x178] sm:$0xff]
    %v466 = vld [vmem:[#allocation5 + $0x180] sm:$0xff]
    %v467 = vld [vmem:[#allocation5 + $0x188] sm:$0xff]
    %v468 = vld [vmem:[#allocation5 + $0x190] sm:$0xff]
    %v469 = vld [vmem:[#allocation5 + $0x198] sm:$0xff]
    %v470 = vld [vmem:[#allocation5 + $0x1a0] sm:$0xff]
    %v471 = vld [vmem:[#allocation5 + $0x1a8] sm:$0xff]
    %v472 = vld [vmem:[#allocation5 + $0x1b0] sm:$0xff]
    %v473 = vld [vmem:[#allocation5 + $0x1b8] sm:$0xff]
    %v474 = vld [vmem:[#allocation5 + $0x1c0] sm:$0xff]
    %v475 = vld [vmem:[#allocation5 + $0x1c8] sm:$0xff]
    %v476 = vld [vmem:[#allocation5 + $0x1d0] sm:$0xff]
    %v477 = vld [vmem:[#allocation5 + $0x1d8] sm:$0xff]
    %v478 = vld [vmem:[#allocation5 + $0x1e0] sm:$0xff]
    %v479 = vld [vmem:[#allocation5 + $0x1e8] sm:$0xff]
    %v480 = vld [vmem:[#allocation5 + $0x1f0] sm:$0xff]
    %v481 = vld [vmem:[#allocation5 + $0x1f8] sm:$0xff]
    %v482 = vld [vmem:[#allocation5 + $0x200] sm:$0xff]
    %v483 = vld [vmem:[#allocation5 + $0x208] sm:$0xff]
    %v484 = vld [vmem:[#allocation5 + $0x210] sm:$0xff]
    %v485 = vld [vmem:[#allocation5 + $0x218] sm:$0xff]
    %v486 = vld [vmem:[#allocation5 + $0x220] sm:$0xff]
    %v487 = vld [vmem:[#allocation5 + $0x228] sm:$0xff]
    %v488 = vld [vmem:[#allocation5 + $0x230] sm:$0xff]
    %v489 = vld [vmem:[#allocation5 + $0x238] sm:$0xff]
    %v490 = vld [vmem:[#allocation5 + $0x240] sm:$0xff]
    %v491 = vld [vmem:[#allocation5 + $0x248] sm:$0xff]
    %v492 = vld [vmem:[#allocation5 + $0x250] sm:$0xff]
    %v493 = vld [vmem:[#allocation5 + $0x258] sm:$0xff]
    %v494 = vld [vmem:[#allocation5 + $0x260] sm:$0xff]
    %v495 = vld [vmem:[#allocation5 + $0x268] sm:$0xff]
    %v496 = vld [vmem:[#allocation5 + $0x270] sm:$0xff]
    %v497 = vld [vmem:[#allocation5 + $0x278] sm:$0xff]
    %v498 = vld [vmem:[#allocation5 + $0x280] sm:$0xff]
    %v499 = vld [vmem:[#allocation5 + $0x288] sm:$0xff]
    %v500 = vld [vmem:[#allocation5 + $0x290] sm:$0xff]
    %v501 = vld [vmem:[#allocation5 + $0x298] sm:$0xff]
    %v502 = vld [vmem:[#allocation5 + $0x2a0] sm:$0xff]
    %v503 = vld [vmem:[#allocation5 + $0x2a8] sm:$0xff]
    %v504 = vld [vmem:[#allocation5 + $0x2b0] sm:$0xff]
    %v505 = vld [vmem:[#allocation5 + $0x2b8] sm:$0xff]
    %v506 = vld [vmem:[#allocation5 + $0x2c0] sm:$0xff]
    %v507 = vld [vmem:[#allocation5 + $0x2c8] sm:$0xff]
    %v508 = vld [vmem:[#allocation5 + $0x2d0] sm:$0xff]
    %v509 = vld [vmem:[#allocation5 + $0x2d8] sm:$0xff]
    %v510 = vld [vmem:[#allocation5 + $0x2e0] sm:$0xff]
    %v511 = vld [vmem:[#allocation5 + $0x2e8] sm:$0xff]
    %v512 = vld [vmem:[#allocation5 + $0x2f0] sm:$0xff]
    %v513 = vld [vmem:[#allocation5 + $0x2f8] sm:$0xff]
    %v514 = vld [vmem:[#allocation5 + $0x300] sm:$0xff]
    %v515 = vld [vmem:[#allocation5 + $0x308] sm:$0xff]
    %v516 = vld [vmem:[#allocation5 + $0x310] sm:$0xff]
    %v517 = vld [vmem:[#allocation5 + $0x318] sm:$0xff]
    %v518 = vld [vmem:[#allocation5 + $0x320] sm:$0xff]
    %v519 = vld [vmem:[#allocation5 + $0x328] sm:$0xff]
    %v520 = vld [vmem:[#allocation5 + $0x330] sm:$0xff]
    %v521 = vld [vmem:[#allocation5 + $0x338] sm:$0xff]
    %v522 = vld [vmem:[#allocation5 + $0x340] sm:$0xff]
    %v523 = vld [vmem:[#allocation5 + $0x348] sm:$0xff]
    %v524 = vld [vmem:[#allocation5 + $0x350] sm:$0xff]
    %v525 = vld [vmem:[#allocation5 + $0x358] sm:$0xff]
    %v526 = vld [vmem:[#allocation5 + $0x360] sm:$0xff]
    %v527 = vld [vmem:[#allocation5 + $0x368] sm:$0xff]
    %v528 = vld [vmem:[#allocation5 + $0x370] sm:$0xff]
    %v529 = vld [vmem:[#allocation5 + $0x378] sm:$0xff]
    %v530 = vld [vmem:[#allocation5 + $0x380] sm:$0xff]
    %v531 = vld [vmem:[#allocation5 + $0x388] sm:$0xff]
    %v532 = vld [vmem:[#allocation5 + $0x390] sm:$0xff]
    %v533 = vld [vmem:[#allocation5 + $0x398] sm:$0xff]
    %v534 = vld [vmem:[#allocation5 + $0x3a0] sm:$0xff]
    %v535 = vld [vmem:[#allocation5 + $0x3a8] sm:$0xff]
    %v536 = vld [vmem:[#allocation5 + $0x3b0] sm:$0xff]
    %v537 = vld [vmem:[#allocation5 + $0x3b8] sm:$0xff]
    %v538 = vld [vmem:[#allocation5 + $0x3c0] sm:$0xff]
    %v539 = vld [vmem:[#allocation5 + $0x3c8] sm:$0xff]
    %v540 = vld [vmem:[#allocation5 + $0x3d0] sm:$0xff]
    %v541 = vld [vmem:[#allocation5 + $0x3d8] sm:$0xff]
    %v542 = vld [vmem:[#allocation5 + $0x3e0] sm:$0xff]
    %v543 = vld [vmem:[#allocation5 + $0x3e8] sm:$0xff]
    %v544 = vld [vmem:[#allocation5 + $0x3f0] sm:$0xff]
    %v545 = vld [vmem:[#allocation5 + $0x3f8] sm:$0xff]
    %v546 = vld [vmem:[#allocation5 + $0x400] sm:$0xff]
    %v547 = vld [vmem:[#allocation5 + $0x408] sm:$0xff]
    %v548 = vld [vmem:[#allocation5 + $0x410] sm:$0xff]
    %v549 = vld [vmem:[#allocation5 + $0x418] sm:$0xff]
    %v550 = vld [vmem:[#allocation5 + $0x420] sm:$0xff]
    %v551 = vld [vmem:[#allocation5 + $0x428] sm:$0xff]
    %v552 = vld [vmem:[#allocation5 + $0x430] sm:$0xff]
    %v553 = vld [vmem:[#allocation5 + $0x438] sm:$0xff]
    %v554 = vld [vmem:[#allocation5 + $0x440] sm:$0xff]
    %v555 = vld [vmem:[#allocation5 + $0x448] sm:$0xff]
    %v556 = vld [vmem:[#allocation5 + $0x450] sm:$0xff]
    %v557 = vld [vmem:[#allocation5 + $0x458] sm:$0xff]
    %v558 = vld [vmem:[#allocation5 + $0x460] sm:$0xff]
    %v559 = vld [vmem:[#allocation5 + $0x468] sm:$0xff]
    %v560 = vld [vmem:[#allocation5 + $0x470] sm:$0xff]
    %v561 = vld [vmem:[#allocation5 + $0x478] sm:$0xff]
    %v562 = vld [vmem:[#allocation5 + $0x480] sm:$0xff]
    %v563 = vld [vmem:[#allocation5 + $0x488] sm:$0xff]
    %v564 = vld [vmem:[#allocation5 + $0x490] sm:$0xff]
    %v565 = vld [vmem:[#allocation5 + $0x498] sm:$0xff]
    %v566 = vld [vmem:[#allocation5 + $0x4a0] sm:$0xff]
    %v567 = vld [vmem:[#allocation5 + $0x4a8] sm:$0xff]
    %v568 = vld [vmem:[#allocation5 + $0x4b0] sm:$0xff]
    %v569 = vld [vmem:[#allocation5 + $0x4b8] sm:$0xff]
    %v570 = vld [vmem:[#allocation5 + $0x4c0] sm:$0xff]
    %v571 = vld [vmem:[#allocation5 + $0x4c8] sm:$0xff]
    %v572 = vld [vmem:[#allocation5 + $0x4d0] sm:$0xff]
    %v573 = vld [vmem:[#allocation5 + $0x4d8] sm:$0xff]
    %v574 = vld [vmem:[#allocation5 + $0x4e0] sm:$0xff]
    %v575 = vld [vmem:[#allocation5 + $0x4e8] sm:$0xff]
    %v576 = vld [vmem:[#allocation5 + $0x4f0] sm:$0xff]
    %v577 = vld [vmem:[#allocation5 + $0x4f8] sm:$0xff]
    %v578 = vld [vmem:[#allocation5 + $0x500] sm:$0xff]
    %v579 = vld [vmem:[#allocation5 + $0x508] sm:$0xff]
    %v580 = vld [vmem:[#allocation5 + $0x510] sm:$0xff]
    %v581 = vld [vmem:[#allocation5 + $0x518] sm:$0xff]
    %v582 = vld [vmem:[#allocation5 + $0x520] sm:$0xff]
    %v583 = vld [vmem:[#allocation5 + $0x528] sm:$0xff]
    %v584 = vld [vmem:[#allocation5 + $0x530] sm:$0xff]
    %v585 = vld [vmem:[#allocation5 + $0x538] sm:$0xff]
    %v586 = vld [vmem:[#allocation5 + $0x540] sm:$0xff]
    %v587 = vld [vmem:[#allocation5 + $0x548] sm:$0xff]
    %v588 = vld [vmem:[#allocation5 + $0x550] sm:$0xff]
    %v589 = vld [vmem:[#allocation5 + $0x558] sm:$0xff]
    %v590 = vld [vmem:[#allocation5 + $0x560] sm:$0xff]
    %v591 = vld [vmem:[#allocation5 + $0x568] sm:$0xff]
    %v592 = vld [vmem:[#allocation5 + $0x570] sm:$0xff]
    %v593 = vld [vmem:[#allocation5 + $0x578] sm:$0xff]
    %v594 = vld [vmem:[#allocation5 + $0x580] sm:$0xff]
    %v595 = vld [vmem:[#allocation5 + $0x588] sm:$0xff]
    %v596 = vld [vmem:[#allocation5 + $0x590] sm:$0xff]
    %v597 = vld [vmem:[#allocation5 + $0x598] sm:$0xff]
    %v598 = vld [vmem:[#allocation5 + $0x5a0] sm:$0xff]
    %v599 = vld [vmem:[#allocation5 + $0x5a8] sm:$0xff]
    %v600 = vld [vmem:[#allocation5 + $0x5b0] sm:$0xff]
    %v601 = vld [vmem:[#allocation5 + $0x5b8] sm:$0xff]
    %v602 = vld [vmem:[#allocation5 + $0x5c0] sm:$0xff]
    %v603 = vld [vmem:[#allocation5 + $0x5c8] sm:$0xff]
    %v604 = vld [vmem:[#allocation5 + $0x5d0] sm:$0xff]
    %v605 = vld [vmem:[#allocation5 + $0x5d8] sm:$0xff]
    %v606 = vld [vmem:[#allocation5 + $0x5e0] sm:$0xff]
    %v607 = vld [vmem:[#allocation5 + $0x5e8] sm:$0xff]
    %v608 = vld [vmem:[#allocation5 + $0x5f0] sm:$0xff]
    %v609 = vld [vmem:[#allocation5 + $0x5f8] sm:$0xff]
    %610 = vmatprep.subr.mxu0 %v464
    %611 = vmatpush1.msra.mxu0 %v463
    %612 = vmatprep.subr.mxu0 %v461
    %613 = vmatpush1.msra.mxu0 %v460
    %614 = vmatprep.subr.mxu0 %v458
    %615 = vmatpush1.msra.mxu0 %v457
    %616 = vmatprep.subr.mxu0 %v455
    %617 = vmatpush1.msra.mxu0 %v454
    %618 = vmatprep.subr.mxu0 %v452
    %619 = vmatpush1.msra.mxu0 %v451
    %620 = vmatprep.subr.mxu0 %v449
    %621 = vmatpush1.msra.mxu0 %v448
    %622 = vmatprep.subr.mxu0 %v446
    %623 = vmatpush1.msra.mxu0 %v445
    %624 = vmatprep.subr.mxu0 %v443
    %625 = vmatpush1.msra.mxu0 %v442
    %626 = vmatprep.subr.mxu0 %v440
    %627 = vmatpush1.msra.mxu0 %v439
    %628 = vmatprep.subr.mxu0 %v437
    %629 = vmatpush1.msra.mxu0 %v436
    %630 = vmatprep.subr.mxu0 %v434
    %631 = vmatpush1.msra.mxu0 %v433
    %632 = vmatprep.subr.mxu0 %v431
    %633 = vmatpush1.msra.mxu0 %v430
    %634 = vmatprep.subr.mxu0 %v428
    %635 = vmatpush1.msra.mxu0 %v427
    %636 = vmatprep.subr.mxu0 %v425
    %637 = vmatpush1.msra.mxu0 %v424
    %638 = vmatprep.subr.mxu0 %v422
    %639 = vmatpush1.msra.mxu0 %v421
    %640 = vmatprep.subr.mxu0 %v419
    %641 = vmatpush1.msra.mxu0 %v418
    %642 = vmatprep.subr.mxu0 %v512
    %643 = vmatpush2.msra.mxu0 %v511
    %644 = vmatprep.subr.mxu0 %v509
    %645 = vmatpush2.msra.mxu0 %v508
    %646 = vmatprep.subr.mxu0 %v506
    %647 = vmatpush2.msra.mxu0 %v505
    %648 = vmatprep.subr.mxu0 %v503
    %649 = vmatpush2.msra.mxu0 %v502
    %650 = vmatprep.subr.mxu0 %v500
    %651 = vmatpush2.msra.mxu0 %v499
    %652 = vmatprep.subr.mxu0 %v497
    %653 = vmatpush2.msra.mxu0 %v496
    %654 = vmatprep.subr.mxu0 %v494
    %655 = vmatpush2.msra.mxu0 %v493
    %656 = vmatprep.subr.mxu0 %v491
    %657 = vmatpush2.msra.mxu0 %v490
    %658 = vmatprep.subr.mxu0 %v488
    %659 = vmatpush2.msra.mxu0 %v487
    %660 = vmatprep.subr.mxu0 %v485
    %661 = vmatpush2.msra.mxu0 %v484
    %662 = vmatprep.subr.mxu0 %v482
    %663 = vmatpush2.msra.mxu0 %v481
    %664 = vmatprep.subr.mxu0 %v479
    %665 = vmatpush2.msra.mxu0 %v478
    %666 = vmatprep.subr.mxu0 %v476
    %667 = vmatpush2.msra.mxu0 %v475
    %668 = vmatprep.subr.mxu0 %v473
    %669 = vmatpush2.msra.mxu0 %v472
    %670 = vmatprep.subr.mxu0 %v470
    %671 = vmatpush2.msra.mxu0 %v469
    %672 = vmatprep.subr.mxu0 %v467
    %673 = vmatpush2.msra.mxu0 %v466
    %674 = vmatprep.mubr.f32.mxu0 %v240
    %675 = vmatmul.mubr.f32.gmra.mxu0 %v239
    %v676 = vpop.f32.mrf.mxu0
    %v677 = vadd.f32 %v344, %v676
    %v678 = vpop.f32.mrf.mxu0
    %v679 = vadd.f32 %v346, %v678
    %680 = vdwg.mxu0
    %681 = vmatprep.subr.mxu0 %v560
    %682 = vmatpush1.msra.mxu0 %v559
    %683 = vmatprep.subr.mxu0 %v557
    %684 = vmatpush1.msra.mxu0 %v556
    %685 = vmatprep.subr.mxu0 %v554
    %686 = vmatpush1.msra.mxu0 %v553
    %687 = vmatprep.subr.mxu0 %v551
    %688 = vmatpush1.msra.mxu0 %v550
    %689 = vmatprep.subr.mxu0 %v548
    %690 = vmatpush1.msra.mxu0 %v547
    %691 = vmatprep.subr.mxu0 %v545
    %692 = vmatpush1.msra.mxu0 %v544
    %693 = vmatprep.subr.mxu0 %v542
    %694 = vmatpush1.msra.mxu0 %v541
    %695 = vmatprep.subr.mxu0 %v539
    %696 = vmatpush1.msra.mxu0 %v538
    %697 = vmatprep.subr.mxu0 %v536
    %698 = vmatpush1.msra.mxu0 %v535
    %699 = vmatprep.subr.mxu0 %v533
    %700 = vmatpush1.msra.mxu0 %v532
    %701 = vmatprep.subr.mxu0 %v530
    %702 = vmatpush1.msra.mxu0 %v529
    %703 = vmatprep.subr.mxu0 %v527
    %704 = vmatpush1.msra.mxu0 %v526
    %705 = vmatprep.subr.mxu0 %v524
    %706 = vmatpush1.msra.mxu0 %v523
    %707 = vmatprep.subr.mxu0 %v521
    %708 = vmatpush1.msra.mxu0 %v520
    %709 = vmatprep.subr.mxu0 %v518
    %710 = vmatpush1.msra.mxu0 %v517
    %711 = vmatprep.subr.mxu0 %v515
    %712 = vmatpush1.msra.mxu0 %v514
    %713 = vmatprep.subr.mxu0 %v608
    %714 = vmatpush2.msra.mxu0 %v607
    %715 = vmatprep.subr.mxu0 %v605
    %716 = vmatpush2.msra.mxu0 %v604
    %717 = vmatprep.subr.mxu0 %v602
    %718 = vmatpush2.msra.mxu0 %v601
    %719 = vmatprep.subr.mxu0 %v599
    %720 = vmatpush2.msra.mxu0 %v598
    %721 = vmatprep.subr.mxu0 %v596
    %722 = vmatpush2.msra.mxu0 %v595
    %723 = vmatprep.subr.mxu0 %v593
    %724 = vmatpush2.msra.mxu0 %v592
    %725 = vmatprep.subr.mxu0 %v590
    %726 = vmatpush2.msra.mxu0 %v589
    %727 = vmatprep.subr.mxu0 %v587
    %728 = vmatpush2.msra.mxu0 %v586
    %729 = vmatprep.subr.mxu0 %v584
    %730 = vmatpush2.msra.mxu0 %v583
    %731 = vmatprep.subr.mxu0 %v581
    %732 = vmatpush2.msra.mxu0 %v580
    %733 = vmatprep.subr.mxu0 %v578
    %734 = vmatpush2.msra.mxu0 %v577
    %735 = vmatprep.subr.mxu0 %v575
    %736 = vmatpush2.msra.mxu0 %v574
    %737 = vmatprep.subr.mxu0 %v572
    %738 = vmatpush2.msra.mxu0 %v571
    %739 = vmatprep.subr.mxu0 %v569
    %740 = vmatpush2.msra.mxu0 %v568
    %741 = vmatprep.subr.mxu0 %v566
    %742 = vmatpush2.msra.mxu0 %v565
    %743 = vmatprep.subr.mxu0 %v563
    %744 = vmatpush2.msra.mxu0 %v562
    %745 = vmatprep.mubr.f32.mxu0 %v242
    %746 = vmatmul.mubr.f32.gmra.mxu0 %v241
    %v747 = vpop.f32.mrf.mxu0
    %v748 = vadd.f32 %v677, %v747
    %v749 = vpop.f32.mrf.mxu0
    %v750 = vadd.f32 %v679, %v749
    %751 = vdwg.mxu0
    %752 = vmatprep.subr.mxu0 0.0
    %753 = vmatpush1.msra.mxu0 %v465
    %754 = vmatprep.subr.mxu0 0.0
    %755 = vmatpush1.msra.mxu0 %v462
    %756 = vmatprep.subr.mxu0 0.0
    %757 = vmatpush1.msra.mxu0 %v459
    %758 = vmatprep.subr.mxu0 0.0
    %759 = vmatpush1.msra.mxu0 %v456
    %760 = vmatprep.subr.mxu0 0.0
    %761 = vmatpush1.msra.mxu0 %v453
    %762 = vmatprep.subr.mxu0 0.0
    %763 = vmatpush1.msra.mxu0 %v450
    %764 = vmatprep.subr.mxu0 0.0
    %765 = vmatpush1.msra.mxu0 %v447
    %766 = vmatprep.subr.mxu0 0.0
    %767 = vmatpush1.msra.mxu0 %v444
    %768 = vmatprep.subr.mxu0 0.0
    %769 = vmatpush1.msra.mxu0 %v441
    %770 = vmatprep.subr.mxu0 0.0
    %771 = vmatpush1.msra.mxu0 %v438
    %772 = vmatprep.subr.mxu0 0.0
    %773 = vmatpush1.msra.mxu0 %v435
    %774 = vmatprep.subr.mxu0 0.0
    %775 = vmatpush1.msra.mxu0 %v432
    %776 = vmatprep.subr.mxu0 0.0
    %777 = vmatpush1.msra.mxu0 %v429
    %778 = vmatprep.subr.mxu0 0.0
    %779 = vmatpush1.msra.mxu0 %v426
    %780 = vmatprep.subr.mxu0 0.0
    %781 = vmatpush1.msra.mxu0 %v423
    %782 = vmatprep.subr.mxu0 0.0
    %783 = vmatpush1.msra.mxu0 %v420
    %784 = vmatprep.subr.mxu0 0.0
    %785 = vmatpush2.msra.mxu0 %v513
    %786 = vmatprep.subr.mxu0 0.0
    %787 = vmatpush2.msra.mxu0 %v510
    %788 = vmatprep.subr.mxu0 0.0
    %789 = vmatpush2.msra.mxu0 %v507
    %790 = vmatprep.subr.mxu0 0.0
    %791 = vmatpush2.msra.mxu0 %v504
    %792 = vmatprep.subr.mxu0 0.0
    %793 = vmatpush2.msra.mxu0 %v501
    %794 = vmatprep.subr.mxu0 0.0
    %795 = vmatpush2.msra.mxu0 %v498
    %796 = vmatprep.subr.mxu0 0.0
    %797 = vmatpush2.msra.mxu0 %v495
    %798 = vmatprep.subr.mxu0 0.0
    %799 = vmatpush2.msra.mxu0 %v492
    %800 = vmatprep.subr.mxu0 0.0
    %801 = vmatpush2.msra.mxu0 %v489
    %802 = vmatprep.subr.mxu0 0.0
    %803 = vmatpush2.msra.mxu0 %v486
    %804 = vmatprep.subr.mxu0 0.0
    %805 = vmatpush2.msra.mxu0 %v483
    %806 = vmatprep.subr.mxu0 0.0
    %807 = vmatpush2.msra.mxu0 %v480
    %808 = vmatprep.subr.mxu0 0.0
    %809 = vmatpush2.msra.mxu0 %v477
    %810 = vmatprep.subr.mxu0 0.0
    %811 = vmatpush2.msra.mxu0 %v474
    %812 = vmatprep.subr.mxu0 0.0
    %813 = vmatpush2.msra.mxu0 %v471
    %814 = vmatprep.subr.mxu0 0.0
    %815 = vmatpush2.msra.mxu0 %v468
    %816 = vmatprep.mubr.f32.mxu0 %v240
    %817 = vmatmul.mubr.f32.gmra.mxu0 %v239
    %v818 = vpop.f32.mrf.mxu0
    %v819 = vadd.f32 %v415, %v818
    %v820 = vpop.f32.mrf.mxu0
    %821 = vdwg.mxu0
    %822 = vmatprep.subr.mxu0 0.0
    %823 = vmatpush1.msra.mxu0 %v561
    %824 = vmatprep.subr.mxu0 0.0
    %825 = vmatpush1.msra.mxu0 %v558
    %826 = vmatprep.subr.mxu0 0.0
    %827 = vmatpush1.msra.mxu0 %v555
    %828 = vmatprep.subr.mxu0 0.0
    %829 = vmatpush1.msra.mxu0 %v552
    %830 = vmatprep.subr.mxu0 0.0
    %831 = vmatpush1.msra.mxu0 %v549
    %832 = vmatprep.subr.mxu0 0.0
    %833 = vmatpush1.msra.mxu0 %v546
    %834 = vmatprep.subr.mxu0 0.0
    %835 = vmatpush1.msra.mxu0 %v543
    %836 = vmatprep.subr.mxu0 0.0
    %837 = vmatpush1.msra.mxu0 %v540
    %838 = vmatprep.subr.mxu0 0.0
    %839 = vmatpush1.msra.mxu0 %v537
    %840 = vmatprep.subr.mxu0 0.0
    %841 = vmatpush1.msra.mxu0 %v534
    %842 = vmatprep.subr.mxu0 0.0
    %843 = vmatpush1.msra.mxu0 %v531
    %844 = vmatprep.subr.mxu0 0.0
    %845 = vmatpush1.msra.mxu0 %v528
    %846 = vmatprep.subr.mxu0 0.0
    %847 = vmatpush1.msra.mxu0 %v525
    %848 = vmatprep.subr.mxu0 0.0
    %849 = vmatpush1.msra.mxu0 %v522
    %850 = vmatprep.subr.mxu0 0.0
    %851 = vmatpush1.msra.mxu0 %v519
    %852 = vmatprep.subr.mxu0 0.0
    %853 = vmatpush1.msra.mxu0 %v516
    %854 = vmatprep.subr.mxu0 0.0
    %855 = vmatpush2.msra.mxu0 %v609
    %856 = vmatprep.subr.mxu0 0.0
    %857 = vmatpush2.msra.mxu0 %v606
    %858 = vmatprep.subr.mxu0 0.0
    %859 = vmatpush2.msra.mxu0 %v603
    %860 = vmatprep.subr.mxu0 0.0
    %861 = vmatpush2.msra.mxu0 %v600
    %862 = vmatprep.subr.mxu0 0.0
    %863 = vmatpush2.msra.mxu0 %v597
    %864 = vmatprep.subr.mxu0 0.0
    %865 = vmatpush2.msra.mxu0 %v594
    %866 = vmatprep.subr.mxu0 0.0
    %867 = vmatpush2.msra.mxu0 %v591
    %868 = vmatprep.subr.mxu0 0.0
    %869 = vmatpush2.msra.mxu0 %v588
    %870 = vmatprep.subr.mxu0 0.0
    %871 = vmatpush2.msra.mxu0 %v585
    %872 = vmatprep.subr.mxu0 0.0
    %873 = vmatpush2.msra.mxu0 %v582
    %874 = vmatprep.subr.mxu0 0.0
    %875 = vmatpush2.msra.mxu0 %v579
    %876 = vmatprep.subr.mxu0 0.0
    %877 = vmatpush2.msra.mxu0 %v576
    %878 = vmatprep.subr.mxu0 0.0
    %879 = vmatpush2.msra.mxu0 %v573
    %880 = vmatprep.subr.mxu0 0.0
    %881 = vmatpush2.msra.mxu0 %v570
    %882 = vmatprep.subr.mxu0 0.0
    %883 = vmatpush2.msra.mxu0 %v567
    %884 = vmatprep.subr.mxu0 0.0
    %885 = vmatpush2.msra.mxu0 %v564
    %886 = vmatprep.mubr.f32.mxu0 %v242
    %887 = vmatmul.mubr.f32.gmra.mxu0 %v241
    %v888 = vpop.f32.mrf.mxu0
    %v889 = vadd.f32 %v819, %v888
    %v890 = vpop.f32.mrf.mxu0
    %891 = vdwg.mxu0
    %v892 = vmax.f32 %v748, 0.0
    %v893 = vmax.f32 %v750, 0.0
    %v894 = vmax.f32 %v889, 0.0
    %v895 = vld [vmem:[%s7] sm:$0x7]
    %v897 = vlaneseq
    %v898 = vshrl.u32 %v897, 7
    %v899 = vsub.s32 0, %v898
    %v900 = vrot.slane %v895, %v899
    %v901 = vlaneseq
    %v902 = vshrl.u32 %v901, 7
    %v903 = vsub.s32 1, %v902
    %v904 = vrot.slane %v895, %v903
    %v905 = vlaneseq
    %v906 = vshrl.u32 %v905, 7
    %v907 = vsub.s32 2, %v906
    %v908 = vrot.slane %v895, %v907
    %v912 = vmul.f32 %v892, %v900
    %v913 = vmul.f32 %v893, %v904
    %v914 = vmul.f32 %v894, %v908
    %v915 = vadd.f32 %v912, %v913
    %v916 = vadd.f32 %v915, %v914
    %917 = vadd.xlane.f32.xlu0 %v916
    %v918 = vpop.xlane.xlu0 %917
    %v919 = vld [vmem:[#allocation2] sm:$0x1]
    %v921 = vlaneseq
    %v922 = vshrl.u32 %v921, 7
    %v923 = vsub.s32 0, %v922
    %v924 = vrot.slane %v919, %v923
    %v926 = vadd.f32 %v918, %v924
    %vm927 = vcmask 7168
    %928 = vst.msk [vmem:[%s9] sm:$0xff] %vm927, %v926
    // Predicated region
    $region46: #{critic_forward.1} parent=1 // pred_check
      _
    $region47: #{critic_forward.1} parent=1 // pred_check_branch
      %930 = sbr.rel (0) target = $region49
    $region48: #{critic_forward.1} parent=1 // pred_region
      _
    $region49: #{critic_forward.1} parent=1 // pred_fallthru
      _
    // Predicated region
    $region50: #{critic_forward.1} parent=1 // pred_check
      _
    $region51: #{critic_forward.1} parent=1 // pred_check_branch
      %932 = sbr.rel (0) target = $region53
    $region52: #{critic_forward.1} parent=1 // pred_region
      _
    $region53: #{critic_forward.1} parent=1 // pred_fallthru
      _
    %933 = vsyncpa [#allocation4], 1
    %934 = vsyncpa [#allocation6], 1

</llo_original>
